<compile_context>
chip_gen: v7x
topology: tpu7x:2x2x1
jax: 0.10.0
libtpu: 0.0.40
codegen_flags: <defaults>
</compile_context>

<pallas_src>
import numpy as np
import jax
import jax.numpy as jnp
from jax import lax
from jax.experimental import pallas as pl
from jax.experimental.pallas import tpu as pltpu

NEG = -1e30          # plain python float sentinel for -inf in the log domain
L_PAD = 128          # padded extended-label length == lane width (caps S <= 63)
B_BLK = 16           # samples per DP grid block (2 f32 vregs of DP state)


def _round_up(x, m):
    return (x + m - 1) // m * m


def _cdiv(a, b):
    return (a + b - 1) // b


def _physical_vmem_bytes():
    try:
        info = pltpu.get_tpu_info()
        v = getattr(info, "vmem_capacity_bytes", None)
        if v:
            return int(v)
    except Exception:
        pass
    return 128 << 20


def _vmem_cap_bytes():
    phys = _physical_vmem_bytes()
    if phys <= (64 << 20):               # v7x: 64 MiB physical, leave compiler headroom
        return max(phys - (12 << 20), 24 << 20)
    return 100 << 20                     # v5e / v6e: 128 MiB physical


def _vmem_limit(need_bytes):
    cap = _vmem_cap_bytes()
    return int(max(32 << 20, min(cap, need_bytes + (8 << 20))))


def _pick_t_tile(T, C):
    """Largest emission T-tile (<=256) whose double-buffered working set fits VMEM."""
    budget = max(_vmem_cap_bytes() - (8 << 20), 8 << 20)

    def need(tt):
        return 4 * (2 * tt * C + 2 * tt * L_PAD + C * L_PAD)

    tt = max(8, min(256, _round_up(T, 8)))
    while tt > 8 and need(tt) > budget:
        tt = max(8, _round_up(tt // 2, 8))
    return tt


# --------------------------------------------------------------------------- kernel 1
def _emission_kernel(order_ref, logp_ref, ext_ref, out_ref, onehot_ref):
    """E[t, s] = logp[t, ext[s]] via a one-hot matmul on the MXU.

    order_ref : SMEM (N_pad,) i32 (scalar prefetch, used only by the index_map)
    logp_ref  : VMEM (1, T_TILE, C) f32
    ext_ref   : VMEM (1, 1, L_PAD) i32
    out_ref   : VMEM (1, T_TILE, L_PAD) f32
    onehot_ref: VMEM (C, L_PAD) f32 scratch, built once per sample (t-tile 0).
    """
    C = logp_ref.shape[2]

    @pl.when(pl.program_id(1) == 0)
    def _():
        class_iota = lax.broadcasted_iota(jnp.int32, (C, L_PAD), 0)
        onehot_ref[...] = (class_iota == ext_ref[0]).astype(jnp.float32)

    out_ref[0] = jnp.dot(
        logp_ref[0], onehot_ref[...],
        preferred_element_type=jnp.float32,
        precision=lax.Precision.HIGHEST)          # exact gather (0/1 operand)


# --------------------------------------------------------------------------- kernel 2
def _ctc_dp_kernel(pred_len_ref, e_ref, ext_ref, tvec_ref, lvec_ref, out_ref,
                   alpha_ref):
    """CTC alpha recursion for B_BLK samples, time chunked through the grid.

    pred_len_ref: SMEM (N_pad,) i32 (scalar prefetch)
    e_ref    : VMEM (T_CHUNK, B_BLK, L_PAD) f32   emission E[t, b, s] (time-major)
    ext_ref  : VMEM (B_BLK, L_PAD) i32            blank-interleaved labels
    tvec_ref : VMEM (B_BLK, L_PAD) i32            per-sample input length
    lvec_ref : VMEM (B_BLK, L_PAD) i32            per-sample 2*tgt_len+1
    out_ref  : VMEM (B_BLK, L_PAD) f32            per-sample nll (lane-broadcast)
    alpha_ref: VMEM (B_BLK, L_PAD) f32 scratch    DP state carried across chunks
    """
    blk = pl.program_id(0)
    c = pl.program_id(1)
    n_chunks = pl.num_programs(1)
    t_chunk = e_ref.shape[0]

    # dynamic trip count: block max of the input lengths (SMEM scalar reads)
    base = blk * B_BLK
    t_max = pred_len_ref[base]
    for i in range(1, B_BLK):
        t_max = jnp.maximum(t_max, pred_len_ref[base + i])
    t_max = jnp.maximum(t_max, 1)

    ext = ext_ref[...]
    tvec = tvec_ref[...]
    lvec = lvec_ref[...]

    # ---- loop-invariant vectors (hoisted out of the DP loop) ----
    lane = lax.broadcasted_iota(jnp.int32, (B_BLK, L_PAD), 1)
    neg = jnp.full((B_BLK, L_PAD), NEG, dtype=jnp.float32)
    mask1 = lane >= 1
    ext_sm2 = pltpu.roll(ext, shift=2, axis=1)
    allow_skip = (ext != 0) & (ext != ext_sm2) & (lane >= 2)

    @pl.when(c == 0)
    def _():
        # virtual t = -1 state: all mass at position 0; step t=0 then yields the
        # standard alpha_0 (positions 0 and 1 only, skip into 2 blocked by blank).
        alpha_ref[...] = jnp.where(lane == 0, 0.0, NEG).astype(jnp.float32)

    t0 = c * t_chunk
    trip = jnp.clip(t_max - t0, 0, t_chunk)

    def do_step(t_local, alpha):
        t = t0 + t_local
        t_safe = jnp.minimum(t_local, t_chunk - 1)      # overrun sub-steps fully gated
        a1 = jnp.where(mask1, pltpu.roll(alpha, shift=1, axis=1), neg)
        a2 = jnp.where(allow_skip, pltpu.roll(alpha, shift=2, axis=1), neg)
        # logsumexp with the "max residual == 0" trick -> 2 exps + 1 log per step
        hi = jnp.maximum(alpha, a1)
        lo = jnp.minimum(alpha, a1)
        m = jnp.maximum(hi, a2)
        r1 = jnp.minimum(hi, a2) - m
        r2 = lo - m
        lse = m + jnp.log(1.0 + jnp.exp(r1) + jnp.exp(r2))
        new_alpha = lse + e_ref[t_safe]                 # contiguous (16, 128) load
        # a sample only advances while t < its own input length
        return jnp.where(t < tvec, new_alpha, alpha)

    def group4(i, alpha):                               # manual 4x unroll
        t_local = i * 4
        alpha = do_step(t_local, alpha)
        alpha = do_step(t_local + 1, alpha)
        alpha = do_step(t_local + 2, alpha)
        alpha = do_step(t_local + 3, alpha)
        return alpha

    alpha = lax.fori_loop(0, (trip + 3) // 4, group4, alpha_ref[...])
    alpha_ref[...] = alpha

    @pl.when(c == n_chunks - 1)
    def _():
        # -log p(labels) = -logsumexp(alpha[L-1], alpha[L-2]) per sample
        is_end = (lane == lvec - 1) | (lane == lvec - 2)
        a_end = jnp.where(is_end, alpha_ref[...], neg)
        mx = jnp.max(a_end, axis=1, keepdims=True)
        nll = -(mx + jnp.log(jnp.sum(jnp.exp(a_end - mx), axis=1, keepdims=True)))
        out_ref[...] = jnp.broadcast_to(nll, (B_BLK, L_PAD))


# --------------------------------------------------------------------------- wrappers
def ctc_nll_pallas(logp_ntc, order, ext2d, pred_sizes, tgt_sizes):
    """Per-sample CTC negative log-likelihood.

    logp_ntc: (N, T, C) f32 log-probs in the ORIGINAL batch order.
    order   : (N_pad,) i32 mapping sorted position -> original sample index.
    ext2d   : (N_pad, L_PAD) i32 blank-interleaved labels (sorted order).
    pred_sizes / tgt_sizes: (N_pad,) i32 (sorted order).
    Returns (N_pad,) f32 nll in sorted order.
    """
    N, T, C = logp_ntc.shape
    N_pad = ext2d.shape[0]
    assert N_pad % B_BLK == 0

    # --- emission gather (one-hot MXU matmul), sorted via index_map only ------
    t_tile = _pick_t_tile(T, C)
    n_t = _cdiv(T, t_tile)
    em_need = 4 * (2 * t_tile * C + 2 * t_tile * L_PAD + C * L_PAD + 4 * L_PAD)
    emission = pl.pallas_call(
        _emission_kernel,
        out_shape=jax.ShapeDtypeStruct((N_pad, T, L_PAD), jnp.float32),
        grid_spec=pltpu.PrefetchScalarGridSpec(
            num_scalar_prefetch=1,
            grid=(N_pad, n_t),
            in_specs=[
                pl.BlockSpec((1, t_tile, C), lambda b, t, order_ref: (order_ref[b], t, 0)),
                pl.BlockSpec((1, 1, L_PAD), lambda b, t, order_ref: (b, 0, 0)),
            ],
            out_specs=pl.BlockSpec((1, t_tile, L_PAD), lambda b, t, order_ref: (b, t, 0)),
            scratch_shapes=[pltpu.VMEM((C, L_PAD), jnp.float32)],
        ),
        compiler_params=pltpu.CompilerParams(
            dimension_semantics=("parallel", "arbitrary"),
            vmem_limit_bytes=_vmem_limit(em_need)),
    )(order, logp_ntc, ext2d[:, None, :])

    # (N_pad, T, L_PAD) -> (T, N_pad, L_PAD): the DP then reads one contiguous
    # (B_BLK, 128) slab per timestep.  This pass is over the small 128-lane
    # emission tensor only (not the logits), so it is cheap.
    e_tbl = jnp.transpose(emission, (1, 0, 2))

    # --- DP: time chunked through the grid, alpha carried in VMEM scratch -----
    t_chunk = max(8, min(256, _round_up(T, 8)))
    n_chunks = _cdiv(T, t_chunk)
    tvec = jnp.broadcast_to(pred_sizes[:, None], (N_pad, L_PAD)).astype(jnp.int32)
    lvec = jnp.broadcast_to((2 * tgt_sizes + 1)[:, None], (N_pad, L_PAD)).astype(jnp.int32)

    dp_need = 4 * (2 * t_chunk * B_BLK * L_PAD + 10 * B_BLK * L_PAD)
    nll_mat = pl.pallas_call(
        _ctc_dp_kernel,
        out_shape=jax.ShapeDtypeStruct((N_pad, L_PAD), jnp.float32),
        grid_spec=pltpu.PrefetchScalarGridSpec(
            num_scalar_prefetch=1,
            grid=(N_pad // B_BLK, n_chunks),
            in_specs=[
                pl.BlockSpec((t_chunk, B_BLK, L_PAD), lambda blk, c, pred: (c, blk, 0)),
                pl.BlockSpec((B_BLK, L_PAD), lambda blk, c, pred: (blk, 0)),
                pl.BlockSpec((B_BLK, L_PAD), lambda blk, c, pred: (blk, 0)),
                pl.BlockSpec((B_BLK, L_PAD), lambda blk, c, pred: (blk, 0)),
            ],
            out_specs=pl.BlockSpec((B_BLK, L_PAD), lambda blk, c, pred: (blk, 0)),
            scratch_shapes=[pltpu.VMEM((B_BLK, L_PAD), jnp.float32)],
        ),
        compiler_params=pltpu.CompilerParams(
            dimension_semantics=("parallel", "arbitrary"),
            vmem_limit_bytes=_vmem_limit(dp_need)),
    )(pred_sizes, e_tbl, ext2d, tvec, lvec)
    return nll_mat[:, 0]


def custom_ctc_loss(logits, labels, prediction_sizes, target_sizes):
    """CustomCTCLoss.forward.

    logits: (T, N, C) log-probabilities (torch.nn.CTCLoss convention, blank=0)
    labels: (N, S) int padded targets; prediction_sizes / target_sizes: (N,) int.
    Returns a scalar float32 loss (mean reduction, zero_infinity, sanitized).
    """
    T, N, C = logits.shape
    S = labels.shape[1]
    assert 2 * S + 1 <= L_PAD, "extended label sequence must fit in one lane vector"

    logp = jnp.transpose(logits, (1, 0, 2)).astype(jnp.float32)      # (N, T, C)
    labels = labels.astype(jnp.int32)
    pred = jnp.minimum(prediction_sizes.astype(jnp.int32), T)
    tgt = target_sizes.astype(jnp.int32)

    # sort by input length -> tight per-block DP trip counts.  Only the SMALL
    # per-sample vectors are physically sorted; logits stay in place and are
    # indexed through `order` inside the emission BlockSpec index_map.
    order = jnp.argsort(pred).astype(jnp.int32)
    labels_s, pred_s, tgt_s = labels[order], pred[order], tgt[order]

    # pad the batch to a multiple of B_BLK with dummy samples (pred=1, tgt=0)
    N_pad = _round_up(N, B_BLK)
    pb = N_pad - N
    if pb:
        order = jnp.concatenate([order, jnp.zeros((pb,), jnp.int32)])
        labels_s = jnp.pad(labels_s, ((0, pb), (0, 0)))
        pred_s = jnp.pad(pred_s, (0, pb), constant_values=1)
        tgt_s = jnp.pad(tgt_s, (0, pb))

    # extended labels: blanks (0) interleaved with the target symbols
    ext2d = jnp.zeros((N_pad, L_PAD), jnp.int32).at[:, 1:2 * S + 1:2].set(labels_s)

    nll = ctc_nll_pallas(logp, order, ext2d, pred_s, tgt_s)[:N]      # sorted order

    # zero_infinity=True: infeasible / infinite / NaN sample losses -> 0
    infeasible = (2 * tgt_s[:N] + 1) > pred_s[:N]
    bad = (~jnp.isfinite(nll)) | (nll > 1e29) | infeasible
    nll = jnp.where(bad, 0.0, nll)

    # reduction='mean': divide each loss by its target length, then batch mean
    per_sample = nll / jnp.maximum(tgt_s[:N].astype(jnp.float32), 1.0)
    loss = jnp.mean(per_sample)

    # CustomCTCLoss.sanitize: inf / NaN total loss -> 0
    loss = jnp.where(jnp.isfinite(loss), loss, 0.0)
    # TODO(synk): CustomCTCLoss.debug() (host-side print + raise on NaN via .item())
    # is host control flow with no Pallas equivalent; NaN is mapped to 0 by sanitize.
    return loss


# --------------------------------------------------------------------------- reference
def _ctc_loss_ref(logits, labels, pred_sizes, tgt_sizes):
    """Pure-numpy reference of torch.nn.CTCLoss(reduction='mean', zero_infinity=True)."""
    logits = np.asarray(logits, np.float64)
    labels = np.asarray(labels)
    pred = np.asarray(pred_sizes)
    tgt = np.asarray(tgt_sizes)
    _, N, _ = logits.shape

    def lse2(a, b):
        m = max(a, b)
        if m == -np.inf:
            return -np.inf
        return m + np.log(np.exp(a - m) + np.exp(b - m))

    total = 0.0
    for n in range(N):
        Tn, Sn = int(pred[n]), int(tgt[n])
        ext = np.zeros(2 * Sn + 1, np.int64)
        ext[1::2] = labels[n, :Sn]
        L = ext.shape[0]
        alpha = np.full(L, -np.inf)
        alpha[0] = logits[0, n, 0]
        if L > 1:
            alpha[1] = logits[0, n, ext[1]]
        for t in range(1, Tn):
            new = np.full(L, -np.inf)
            for s in range(L):
                v = alpha[s]
                if s >= 1:
                    v = lse2(v, alpha[s - 1])
                if s >= 2 and ext[s] != 0 and ext[s] != ext[s - 2]:
                    v = lse2(v, alpha[s - 2])
                new[s] = v + logits[t, n, ext[s]]
            alpha = new
        tail = alpha[L - 1] if L < 2 else lse2(alpha[L - 1], alpha[L - 2])
        nll = -tail
        if not np.isfinite(nll):
            nll = 0.0
        total += nll / max(Sn, 1)
    return total / N


if __name__ == "__main__":
    key = jax.random.PRNGKey(0)
    T, N, C, S = 16, 2, 8, 4
    k1, k2 = jax.random.split(key)
    raw = jax.random.normal(k1, (T, N, C), jnp.float32)
    logits = jax.nn.log_softmax(raw, axis=-1)                        # (T, N, C) log-probs
    labels = jax.random.randint(k2, (N, S), 1, C).astype(jnp.int32)  # no blanks in targets
    prediction_sizes = jnp.array([T, T - 2], jnp.int32)
    target_sizes = jnp.array([S, S - 1], jnp.int32)

    loss = custom_ctc_loss(logits, labels, prediction_sizes, target_sizes)
    loss = jax.block_until_ready(loss)

    ref = _ctc_loss_ref(np.asarray(logits), np.asarray(labels),
                        np.asarray(prediction_sizes), np.asarray(target_sizes))
    assert loss.shape == () and bool(jnp.isfinite(loss))
    np.testing.assert_allclose(float(loss), float(ref), rtol=2e-3, atol=2e-3)
    print("KERNEL_OK")
</pallas_src>

<mosaic_0001>
module attributes {stable_mosaic.version = 11 : i64} {
  func.func @_emission_kernel(%arg0: i32, %arg1: i32, %arg2: memref<16xi32, #tpu.memory_space<smem>>, %arg3: memref<1x16x8xf32, #tpu.memory_space<vmem>>, %arg4: memref<1x1x128xi32, #tpu.memory_space<vmem>>, %arg5: memref<1x16x128xf32, #tpu.memory_space<vmem>>, %arg6: memref<8x128xf32, #tpu.memory_space<vmem>>) attributes {dimension_semantics = [#tpu.dimension_semantics<parallel>, #tpu.dimension_semantics<arbitrary>], iteration_bounds = array<i64: 16, 1>, scalar_prefetch = 1 : i64, scratch_operands = 1 : i64, tpu.core_type = #tpu.core_type<tc>, window_params = [{transform_indices = @transform_0, window_bounds = array<i64: 1, 16, 8>}, {transform_indices = @transform_1, window_bounds = array<i64: 1, 1, 128>}, {transform_indices = @transform_2, window_bounds = array<i64: 1, 16, 128>}]} {
    %c0_i32 = arith.constant 0 : i32
    %0 = arith.cmpi eq, %arg1, %c0_i32 : i32
    %1 = arith.extui %0 : i1 to i32
    %c0_i32_0 = arith.constant 0 : i32
    %2 = arith.cmpi ne, %1, %c0_i32_0 : i32
    scf.if %2 {
      %10 = tpu.iota {dimensions = array<i32: 0>} : vector<8x128xi32>
      %c0_8 = arith.constant 0 : index
      %c0_9 = arith.constant 0 : index
      %c0_10 = arith.constant 0 : index
      %11 = vector.load %arg4[%c0_8, %c0_9, %c0_10] : memref<1x1x128xi32, #tpu.memory_space<vmem>>, vector<1x1x128xi32>
      %12 = vector.shape_cast %11 : vector<1x1x128xi32> to vector<1x128xi32>
      %13 = vector.broadcast %12 : vector<1x128xi32> to vector<8x128xi32>
      %14 = arith.cmpi eq, %10, %13 : vector<8x128xi32>
      %15 = arith.extui %14 : vector<8x128xi1> to vector<8x128xi32>
      %16 = arith.sitofp %15 : vector<8x128xi32> to vector<8x128xf32>
      %c0_11 = arith.constant 0 : index
      %c0_12 = arith.constant 0 : index
      %17 = vector.load %arg6[%c0_11, %c0_12] : memref<8x128xf32, #tpu.memory_space<vmem>>, vector<8x128xf32>
      tpu.vector_store %arg6[%c0_11, %c0_12], %16 {strides = array<i32>} : memref<8x128xf32, #tpu.memory_space<vmem>>, vector<8x128xf32>,
    } else {
    }
    %c0 = arith.constant 0 : index
    %c0_1 = arith.constant 0 : index
    %c0_2 = arith.constant 0 : index
    %3 = vector.load %arg3[%c0, %c0_1, %c0_2] : memref<1x16x8xf32, #tpu.memory_space<vmem>>, vector<1x16x8xf32>
    %4 = vector.shape_cast %3 : vector<1x16x8xf32> to vector<16x8xf32>
    %c0_3 = arith.constant 0 : index
    %c0_4 = arith.constant 0 : index
    %5 = vector.load %arg6[%c0_3, %c0_4] : memref<8x128xf32, #tpu.memory_space<vmem>>, vector<8x128xf32>
    %cst = arith.constant dense<0.000000e+00> : vector<16x128xf32>
    %6 = tpu.matmul %4, %5, %cst {dimension_numbers = #tpu.dot_dimension_numbers<[1], [0], [0], [1], [0, 0, 1, 1], [], []>, precision = #tpu.contract_precision<fp32>} : vector<16x8xf32>, vector<8x128xf32>, vector<16x128xf32> -> vector<16x128xf32>
    %c0_5 = arith.constant 0 : index
    %c0_6 = arith.constant 0 : index
    %c0_7 = arith.constant 0 : index
    %7 = vector.load %arg5[%c0_5, %c0_6, %c0_7] : memref<1x16x128xf32, #tpu.memory_space<vmem>>, vector<1x16x128xf32>
    %8 = vector.shape_cast %7 : vector<1x16x128xf32> to vector<16x128xf32>
    %9 = vector.shape_cast %6 : vector<16x128xf32> to vector<1x16x128xf32>
    tpu.vector_store %arg5[%c0_5, %c0_6, %c0_7], %9 {strides = array<i32>} : memref<1x16x128xf32, #tpu.memory_space<vmem>>, vector<1x16x128xf32>,
    return
  }
  func.func @transform_0(%arg0: i32, %arg1: i32, %arg2: memref<16xi32, #tpu.memory_space<smem>>) -> (i32, i32, i32) {
    %0 = arith.index_cast %arg0 : i32 to index
    %1 = memref.load %arg2[%0] : memref<16xi32, #tpu.memory_space<smem>>
    %c0_i32 = arith.constant 0 : i32
    %c0_i32_0 = arith.constant 0 : i32
    return %1, %arg1, %c0_i32 : i32, i32, i32
  }
  func.func @transform_1(%arg0: i32, %arg1: i32, %arg2: memref<16xi32, #tpu.memory_space<smem>>) -> (i32, i32, i32) {
    %c0_i32 = arith.constant 0 : i32
    %c0_i32_0 = arith.constant 0 : i32
    %c0_i32_1 = arith.constant 0 : i32
    return %arg0, %c0_i32, %c0_i32_0 : i32, i32, i32
  }
  func.func @transform_2(%arg0: i32, %arg1: i32, %arg2: memref<16xi32, #tpu.memory_space<smem>>) -> (i32, i32, i32) {
    %c0_i32 = arith.constant 0 : i32
    %c0_i32_0 = arith.constant 0 : i32
    return %arg0, %arg1, %c0_i32 : i32, i32, i32
  }
}

</mosaic_0001>

<llo_original>
// kernel: tpu_custom_call.1
$region0: #{tpu_custom_call.1}
  #allocation0 [shape = 'u32[]', space=smem, size = 0x4, offset = 0x4, fixed_abs, tag = 'smem constant byte address 0x4 - core index']
  #allocation1 [shape = 'u32[144,128]{1,0:T(1,128)}', space=vmem, size = 0x12000, scoped, tag = 'internal scratch']
  #allocation2 [shape = 'f32[8,128]{1,0:T(8,128)}', space=vmem, size = 0x1000, scoped, tag = 'scratch operand']
  #allocation3 [shape = 's32[1]{0}', space=sflag, size = 0x4, scoped, tag = 'scoped memory for tpu_custom_call.1']
  #allocation4 [shape = 'u8[512]{0}', space=smem, size = 0x200, scoped, tag = 'prefetched SMEM operand 0']
  %s0 = inlined_call_operand.vmem [shape: s32[16], index: 0, kind: input, shape index: {}]
  %s1 = inlined_call_operand.vmem [shape: f32[2,16,8], index: 1, kind: input, shape index: {}]
  %s2 = inlined_call_operand.vmem [shape: s32[16,1,128], index: 2, kind: input, shape index: {}]
  %s3 = inlined_call_operand.hbm [shape: f32[16,16,128], index: 3, kind: output, shape index: {}]
  %s4 = sld [smem:[#allocation0]]
  $region45: #{tpu_custom_call.1} parent=0
    _
  %s6 = ssub.s32 1, %s4
  %s7 = scalar_select 0, %s6, %s4
  %s8 = sshll.u32 %s0, 4
  %s9 = int_to_ptr.vmem [resolvable:$true] %s8
  %11 = dma.vmem_to_smem %s9, 16, [#allocation4], [#allocation3]
  %12 = dma.done [#allocation3], 16
  %13 = sfence
  $region1: #{tpu_custom_call.1} parent=0
    #allocation5 [shape = 'u8[16384]{0}', space=vmem, size = 0x4000, scoped, tag = 'output window, operand 0']
    #allocation6 [shape = 's32[2]{0}', space=sflag, size = 0x8, scoped, tag = 'scoped memory for tpu_custom_call.1']
    %14 = vsyncpa [#allocation6], 0
    %s15 = scalar_lea.sflag [#allocation6], 1
    %16 = vsyncpa %s15, 0
    loop: start=0, step=1, limit=18
    $region2: #{tpu_custom_call.1} parent=1 // loop_pre_header
      _
    $region3: #{tpu_custom_call.1} parent=1 // loop_header
      %s18 = sphi 0, %s22
      %p19 = scmp.ge.s32.totalorder %s18, 18
      %s25 = sphi 0, %s37
      %s26 = sphi 0, %s33
      %s27 = sphi 0, %s25
      %s28 = sphi 0, %s26
      %s29 = sphi 0, %s27
      %s30 = sphi 0, %s28
      %s44 = sphi 0, %s46
      %s47 = sphi 0, %s44
      %s48 = sphi 0, %s47
      %s64 = sphi 0, %s48
      %s70 = sphi 0, %s72
      %s73 = sphi 0, %s70
      %s74 = sphi 0, %s73
      %s90 = sphi 0, %s74
      %s98 = sphi 0, %s100
      %s101 = sphi 0, %s98
      %s102 = sphi 0, %s101
      %s118 = sphi 0, %s102
    $region4: #{tpu_custom_call.1} parent=1 // loop_header_branch
      %21 = sbr.rel (%p19) target = $region8
    $region5: #{tpu_custom_call.1} parent=1 // loop_body
      %s23 = ssub.s32 %s18, 1
      %s24 = ssub.s32 %s18, 2
      %s31 = sadd.s32 1, %s26
      %p32 = scmp.ge.s32.totalorder %s31, 1
      %s33 = scalar_select %p32, 0, %s31
      %s34 = sadd.s32 1, %s25
      %s35 = scalar_select %p32, %s34, %s25
      %p36 = scmp.ge.s32.totalorder %s35, 16
      %s37 = scalar_select %p36, 0, %s35
      %s38 = sld [smem:[#allocation4 + %s25]]
      %s39 = sld [smem:[#allocation4 + %s37]]
      %s40 = ssub.s32 %s38, %s39
      %s41 = ssub.s32 %s26, %s33
      %s42 = sor.u32 %s40, %s41
      %p43 = scmp.eq.s32.totalorder %s42, 0
      %s45 = sadd.s32 %s44, 1
      %s46 = scalar_select %p43, %s44, %s45
      %p49 = pneg %p43
      %p50 = scmp.eq.s32.totalorder %s18, 15
      %p51 = por %p49, %p50
      %p52 = scmp.ne.s32.totalorder %s44, %s47
      %p53 = scmp.eq.s32.totalorder %s18, 0
      %p54 = por %p52, %p53
      %p55 = scmp.ne.s32.totalorder %s44, %s47
      %p56 = scmp.eq.s32.totalorder %s23, 15
      %p57 = por %p55, %p56
      %p58 = scmp.ne.s32.totalorder %s47, %s48
      %p59 = scmp.eq.s32.totalorder %s23, 0
      %p60 = por %p58, %p59
      %p61 = scmp.ne.s32.totalorder %s47, %s48
      %p62 = scmp.eq.s32.totalorder %s24, 15
      %p63 = por %p61, %p62
      %p65 = scmp.ne.s32.totalorder %s48, %s64
      %p66 = scmp.eq.s32.totalorder %s24, 0
      %p67 = por %p65, %p66
      %s68 = ssub.s32 %s25, %s37
      %p69 = scmp.eq.s32.totalorder %s68, 0
      %s71 = sadd.s32 %s70, 1
      %s72 = scalar_select %p69, %s70, %s71
      %p75 = pneg %p69
      %p76 = scmp.eq.s32.totalorder %s18, 15
      %p77 = por %p75, %p76
      %p78 = scmp.ne.s32.totalorder %s70, %s73
      %p79 = scmp.eq.s32.totalorder %s18, 0
      %p80 = por %p78, %p79
      %p81 = scmp.ne.s32.totalorder %s70, %s73
      %p82 = scmp.eq.s32.totalorder %s23, 15
      %p83 = por %p81, %p82
      %p84 = scmp.ne.s32.totalorder %s73, %s74
      %p85 = scmp.eq.s32.totalorder %s23, 0
      %p86 = por %p84, %p85
      %p87 = scmp.ne.s32.totalorder %s73, %s74
      %p88 = scmp.eq.s32.totalorder %s24, 15
      %p89 = por %p87, %p88
      %p91 = scmp.ne.s32.totalorder %s74, %s90
      %p92 = scmp.eq.s32.totalorder %s24, 0
      %p93 = por %p91, %p92
      %s94 = ssub.s32 %s25, %s37
      %s95 = ssub.s32 %s26, %s33
      %s96 = sor.u32 %s94, %s95
      %p97 = scmp.eq.s32.totalorder %s96, 0
      %s99 = sadd.s32 %s98, 1
      %s100 = scalar_select %p97, %s98, %s99
      %p103 = pneg %p97
      %p104 = scmp.eq.s32.totalorder %s18, 15
      %p105 = por %p103, %p104
      %p106 = scmp.ne.s32.totalorder %s98, %s101
      %p107 = scmp.eq.s32.totalorder %s18, 0
      %p108 = por %p106, %p107
      %p109 = scmp.ne.s32.totalorder %s98, %s101
      %p110 = scmp.eq.s32.totalorder %s23, 15
      %p111 = por %p109, %p110
      %p112 = scmp.ne.s32.totalorder %s101, %s102
      %p113 = scmp.eq.s32.totalorder %s23, 0
      %p114 = por %p112, %p113
      %p115 = scmp.ne.s32.totalorder %s101, %s102
      %p116 = scmp.eq.s32.totalorder %s24, 15
      %p117 = por %p115, %p116
      %p119 = scmp.ne.s32.totalorder %s102, %s118
      %p120 = scmp.eq.s32.totalorder %s24, 0
      %p121 = por %p119, %p120
      %p122 = scmp.le.s32.totalorder 1, %s18
      %p123 = scmp.lt.s32.totalorder %s18, 17
      %p124 = pnand %p122, %p123
      %p125 = pneg %p124
      // Predicated region
      $region9: #{tpu_custom_call.1} parent=5 // pred_check
        _
      $region10: #{tpu_custom_call.1} parent=5 // pred_check_branch
        %127 = sbr.rel (%p124) target = $region12
      $region11: #{tpu_custom_call.1} parent=5 // pred_region
        %s128 = ssub.s32 %s18, 1
      $region12: #{tpu_custom_call.1} parent=5 // pred_fallthru
        _
      %p129 = scmp.lt.s32.totalorder %s18, 16
      // Predicated region
      $region13: #{tpu_custom_call.1} parent=5 // pred_check
        %p130 = pneg %p129
      $region14: #{tpu_custom_call.1} parent=5 // pred_check_branch
        %132 = sbr.rel (%p130) target = $region16
      $region15: #{tpu_custom_call.1} parent=5 // pred_region
        // Predicated region
        $region17: #{tpu_custom_call.1} parent=15 // pred_check
          %p133 = pneg %p54
        $region18: #{tpu_custom_call.1} parent=15 // pred_check_branch
          %135 = sbr.rel (%p133) target = $region20
        $region19: #{tpu_custom_call.1} parent=15 // pred_region
          %s136 = sld [smem:[#allocation4 + %s25]]
          %s137 = smul.u32 2, %s26
          %p138 = scmp.lt.s32.totalorder %s136, 1
          %s139 = scalar_select %p138, %s136, 1
          %p140 = scmp.lt.s32.totalorder %s137, 1
          %s141 = scalar_select %p140, %s137, 1
          %s142 = smul.addr %s139, 2
          %s143 = sadd.s32 %s141, %s142
          %s144 = smul.addr %s143, 8
          %s145 = scalar_lea.vmem %s1, %s144
          %s146 = sld [smem:[#allocation4 + %s25]]
          %s147 = smul.u32 2, %s26
        $region20: #{tpu_custom_call.1} parent=15 // pred_fallthru
          _
        // Predicated region
        $region21: #{tpu_custom_call.1} parent=15 // pred_check
          %p148 = pneg %p80
        $region22: #{tpu_custom_call.1} parent=15 // pred_check_branch
          %150 = sbr.rel (%p148) target = $region24
        $region23: #{tpu_custom_call.1} parent=15 // pred_region
          %p151 = scmp.lt.s32.totalorder %s25, 15
          %s152 = scalar_select %p151, %s25, 15
          %s153 = scalar_lea.vmem %s2, %s152
        $region24: #{tpu_custom_call.1} parent=15 // pred_fallthru
          _
      $region16: #{tpu_custom_call.1} parent=5 // pred_fallthru
        _
      %p154 = scmp.le.s32.totalorder 1, %s18
      %p155 = scmp.lt.s32.totalorder %s18, 17
      %p156 = pnand %p154, %p155
      %p157 = pneg %p156
      // Predicated region
      $region25: #{tpu_custom_call.1} parent=5 // pred_check
        _
      $region26: #{tpu_custom_call.1} parent=5 // pred_check_branch
        %159 = sbr.rel (%p156) target = $region28
      $region27: #{tpu_custom_call.1} parent=5 // pred_region
        %s160 = ssub.s32 %s18, 1
        %s161 = sld [smem:[#allocation4 + %s27]]
        %s162 = smul.u32 2, %s28
        %p163 = scmp.lt.s32.totalorder %s161, 1
        %s164 = scalar_select %p163, %s161, 1
        %p165 = scmp.lt.s32.totalorder %s162, 1
        %s166 = scalar_select %p165, %s162, 1
        %s167 = smul.addr %s164, 2
        %s168 = sadd.s32 %s166, %s167
        %s169 = smul.addr %s168, 8
        %s170 = scalar_lea.vmem %s1, %s169
        %p171 = pneg %p60
        %p172 = pneg %p57
        %p173 = scmp.lt.s32.totalorder %s27, 15
        %s174 = scalar_select %p173, %s27, 15
        %s175 = scalar_lea.vmem %s2, %s174
        %p176 = pneg %p86
        %p177 = pneg %p83
        %p178 = pneg %p114
        %p179 = pneg %p111
        %s180 = sand.u32 %s101, 1
        %s181 = scalar_lea.sflag [#allocation6], %s180
        %s182 = sand.u32 %s101, 1
        %s183 = smul.addr %s182, 16
        %s184 = scalar_lea.vmem [#allocation5], %s183
        %s185 = sld [smem:[#allocation4 + %s27]]
        %s186 = smul.u32 2, %s28
        %p187 = scmp.lt.s32.totalorder %s185, 1
        %s188 = scalar_select %p187, %s185, 1
        %p189 = scmp.lt.s32.totalorder %s186, 1
        %s190 = scalar_select %p189, %s186, 1
        %s191 = smul.addr %s188, 2
        %s192 = sadd.s32 %s190, %s191
        %s193 = smul.addr %s192, 8
        %s194 = scalar_lea.vmem %s1, %s193
        %s195 = sld [smem:[#allocation4 + %s27]]
        %s196 = smul.u32 2, %s28
        %p197 = scmp.lt.s32.totalorder %s27, 15
        %s198 = scalar_select %p197, %s27, 15
        %s199 = scalar_lea.vmem %s2, %s198
        %s200 = smul.u32 2, %s28
        %p201 = scmp.eq.s32.totalorder %s28, 0
        // Predicated region
        $region29: #{tpu_custom_call.1} parent=27 // pred_check
          %p202 = pneg %p201
        $region30: #{tpu_custom_call.1} parent=27 // pred_check_branch
          %204 = sbr.rel (%p202) target = $region32
        $region31: #{tpu_custom_call.1} parent=27 // pred_region
          %v205 = vlaneseq
          %v206 = vshrl.u32 %v205, 7
          %v207 = vld [vmem:[%s199] sm:$0x1]
          %v208 = vlaneseq
          %v209 = vshrl.u32 %v208, 7
          %v210 = vsub.s32 0, %v209
          %v211 = vrot.slane %v207, %v210
          %vm212 = vcmp.eq.s32.totalorder %v206, %v211
          %v213 = vsel %vm212, 1, 0
          %v214 = vcvt.s32.f32 %v213
          %215 = vst [vmem:[#allocation2] sm:$0xff] %v214
        $region32: #{tpu_custom_call.1} parent=27 // pred_fallthru
          _
        %v216 = vld [vmem:[%s194] sm:$0xff]
        %v217 = vld [vmem:[%s194 + $0x8] sm:$0xff]
        %v218 = vld [vmem:[#allocation2] sm:$0xff]
        %vm219 = vcmask 64512
        %v221 = vsel %vm219, %v216, 0
        %v224 = vsel %vm219, %v217, 0
        %226 = vmatprep.subr.mxu0 0.0
        %v227 = vand.u32 %v218, 4294901760
        %228 = vmatpush1.msra.mxu0 %v227
        %229 = vmatprep.subr.mxu0 0.0
        %230 = vmatpush1.msra.mxu0 0.0
        %231 = vmatprep.subr.mxu0 0.0
        %232 = vmatpush1.msra.mxu0 0.0
        %233 = vmatprep.subr.mxu0 0.0
        %234 = vmatpush1.msra.mxu0 0.0
        %235 = vmatprep.subr.mxu0 0.0
        %236 = vmatpush1.msra.mxu0 0.0
        %237 = vmatprep.subr.mxu0 0.0
        %238 = vmatpush1.msra.mxu0 0.0
        %239 = vmatprep.subr.mxu0 0.0
        %240 = vmatpush1.msra.mxu0 0.0
        %241 = vmatprep.subr.mxu0 0.0
        %242 = vmatpush1.msra.mxu0 0.0
        %243 = vmatprep.subr.mxu0 0.0
        %244 = vmatpush1.msra.mxu0 0.0
        %245 = vmatprep.subr.mxu0 0.0
        %246 = vmatpush1.msra.mxu0 0.0
        %247 = vmatprep.subr.mxu0 0.0
        %248 = vmatpush1.msra.mxu0 0.0
        %249 = vmatprep.subr.mxu0 0.0
        %250 = vmatpush1.msra.mxu0 0.0
        %251 = vmatprep.subr.mxu0 0.0
        %252 = vmatpush1.msra.mxu0 0.0
        %253 = vmatprep.subr.mxu0 0.0
        %254 = vmatpush1.msra.mxu0 0.0
        %255 = vmatprep.subr.mxu0 0.0
        %256 = vmatpush1.msra.mxu0 0.0
        %257 = vmatprep.subr.mxu0 0.0
        %258 = vmatpush1.msra.mxu0 0.0
        %259 = vmatprep.subr.mxu0 0.0
        %260 = vmatpush1.msra.mxu0 0.0
        %261 = vmatprep.subr.mxu0 0.0
        %262 = vmatpush1.msra.mxu0 0.0
        %263 = vmatprep.subr.mxu0 0.0
        %264 = vmatpush1.msra.mxu0 0.0
        %265 = vmatprep.subr.mxu0 0.0
        %266 = vmatpush1.msra.mxu0 0.0
        %267 = vmatprep.subr.mxu0 0.0
        %268 = vmatpush1.msra.mxu0 0.0
        %269 = vmatprep.subr.mxu0 0.0
        %270 = vmatpush1.msra.mxu0 0.0
        %271 = vmatprep.subr.mxu0 0.0
        %272 = vmatpush1.msra.mxu0 0.0
        %273 = vmatprep.subr.mxu0 0.0
        %274 = vmatpush1.msra.mxu0 0.0
        %275 = vmatprep.subr.mxu0 0.0
        %276 = vmatpush1.msra.mxu0 0.0
        %277 = vmatprep.subr.mxu0 0.0
        %278 = vmatpush1.msra.mxu0 0.0
        %279 = vmatprep.subr.mxu0 0.0
        %280 = vmatpush1.msra.mxu0 0.0
        %281 = vmatprep.subr.mxu0 0.0
        %282 = vmatpush1.msra.mxu0 0.0
        %283 = vmatprep.subr.mxu0 0.0
        %284 = vmatpush1.msra.mxu0 0.0
        %285 = vmatprep.subr.mxu0 0.0
        %286 = vmatpush1.msra.mxu0 0.0
        %287 = vmatprep.subr.mxu0 0.0
        %288 = vmatpush1.msra.mxu0 0.0
        %289 = vmatprep.subr.mxu0 0.0
        %290 = vmatpush1.msra.mxu0 0.0
        %291 = vmatprep.mubr.f32.mxu0 0.0
        %v292 = vand.u32 %v221, 4294901760
        %v293 = vsub.f32 %v221, %v292
        %v294 = vand.u32 %v293, 4294901760
        %v295 = vsub.f32 %v293, %v294
        %v296 = vand.u32 %v295, 4294901760
        %297 = vmatmul.mubr.f32.gmra.mrb[0].mxu0 %v296
        %v298 = vpop.f32.mrb[0].mxu0
        %v299 = vadd.f32 0.0, %v298
        %v300 = vpop.f32.mrb[0].mxu0
        %301 = vmatprep.mubr.f32.mxu0 0.0
        %v302 = vand.u32 %v224, 4294901760
        %v303 = vsub.f32 %v224, %v302
        %v304 = vand.u32 %v303, 4294901760
        %v305 = vsub.f32 %v303, %v304
        %v306 = vand.u32 %v305, 4294901760
        %307 = vmatmul.mubr.f32.gmra.mrb[0].mxu0 %v306
        %v308 = vpop.f32.mrb[0].mxu0
        %v309 = vadd.f32 0.0, %v308
        %v310 = vpop.f32.mrb[0].mxu0
        %311 = vdwg.mxu0
        %312 = vmatprep.subr.mxu0 0.0
        %v313 = vand.u32 %v218, 4294901760
        %v314 = vsub.f32 %v218, %v313
        %v315 = vand.u32 %v314, 4294901760
        %v316 = vsub.f32 %v314, %v315
        %v317 = vand.u32 %v316, 4294901760
        %318 = vmatpush1.msra.mxu0 %v317
        %319 = vmatprep.subr.mxu0 0.0
        %320 = vmatpush1.msra.mxu0 0.0
        %321 = vmatprep.subr.mxu0 0.0
        %322 = vmatpush1.msra.mxu0 0.0
        %323 = vmatprep.subr.mxu0 0.0
        %324 = vmatpush1.msra.mxu0 0.0
        %325 = vmatprep.subr.mxu0 0.0
        %326 = vmatpush1.msra.mxu0 0.0
        %327 = vmatprep.subr.mxu0 0.0
        %328 = vmatpush1.msra.mxu0 0.0
        %329 = vmatprep.subr.mxu0 0.0
        %330 = vmatpush1.msra.mxu0 0.0
        %331 = vmatprep.subr.mxu0 0.0
        %332 = vmatpush1.msra.mxu0 0.0
        %333 = vmatprep.subr.mxu0 0.0
        %334 = vmatpush1.msra.mxu0 0.0
        %335 = vmatprep.subr.mxu0 0.0
        %336 = vmatpush1.msra.mxu0 0.0
        %337 = vmatprep.subr.mxu0 0.0
        %338 = vmatpush1.msra.mxu0 0.0
        %339 = vmatprep.subr.mxu0 0.0
        %340 = vmatpush1.msra.mxu0 0.0
        %341 = vmatprep.subr.mxu0 0.0
        %342 = vmatpush1.msra.mxu0 0.0
        %343 = vmatprep.subr.mxu0 0.0
        %344 = vmatpush1.msra.mxu0 0.0
        %345 = vmatprep.subr.mxu0 0.0
        %346 = vmatpush1.msra.mxu0 0.0
        %347 = vmatprep.subr.mxu0 0.0
        %348 = vmatpush1.msra.mxu0 0.0
        %349 = vmatprep.subr.mxu0 0.0
        %350 = vmatpush1.msra.mxu0 0.0
        %351 = vmatprep.subr.mxu0 0.0
        %352 = vmatpush1.msra.mxu0 0.0
        %353 = vmatprep.subr.mxu0 0.0
        %354 = vmatpush1.msra.mxu0 0.0
        %355 = vmatprep.subr.mxu0 0.0
        %356 = vmatpush1.msra.mxu0 0.0
        %357 = vmatprep.subr.mxu0 0.0
        %358 = vmatpush1.msra.mxu0 0.0
        %359 = vmatprep.subr.mxu0 0.0
        %360 = vmatpush1.msra.mxu0 0.0
        %361 = vmatprep.subr.mxu0 0.0
        %362 = vmatpush1.msra.mxu0 0.0
        %363 = vmatprep.subr.mxu0 0.0
        %364 = vmatpush1.msra.mxu0 0.0
        %365 = vmatprep.subr.mxu0 0.0
        %366 = vmatpush1.msra.mxu0 0.0
        %367 = vmatprep.subr.mxu0 0.0
        %368 = vmatpush1.msra.mxu0 0.0
        %369 = vmatprep.subr.mxu0 0.0
        %370 = vmatpush1.msra.mxu0 0.0
        %371 = vmatprep.subr.mxu0 0.0
        %372 = vmatpush1.msra.mxu0 0.0
        %373 = vmatprep.subr.mxu0 0.0
        %374 = vmatpush1.msra.mxu0 0.0
        %375 = vmatprep.subr.mxu0 0.0
        %376 = vmatpush1.msra.mxu0 0.0
        %377 = vmatprep.subr.mxu0 0.0
        %378 = vmatpush1.msra.mxu0 0.0
        %379 = vmatprep.subr.mxu0 0.0
        %380 = vmatpush1.msra.mxu0 0.0
        %381 = vmatprep.mubr.f32.mxu0 0.0
        %v382 = vand.u32 %v221, 4294901760
        %383 = vmatmul.mubr.f32.gmra.mrb[0].mxu0 %v382
        %v384 = vpop.f32.mrb[0].mxu0
        %v385 = vadd.f32 %v299, %v384
        %v386 = vpop.f32.mrb[0].mxu0
        %387 = vmatprep.mubr.f32.mxu0 0.0
        %v388 = vand.u32 %v224, 4294901760
        %389 = vmatmul.mubr.f32.gmra.mrb[0].mxu0 %v388
        %v390 = vpop.f32.mrb[0].mxu0
        %v391 = vadd.f32 %v309, %v390
        %v392 = vpop.f32.mrb[0].mxu0
        %393 = vdwg.mxu0
        %394 = vmatprep.subr.mxu0 0.0
        %v395 = vand.u32 %v218, 4294901760
        %v396 = vsub.f32 %v218, %v395
        %397 = vmatpush1.msra.mxu0 %v396
        %398 = vmatprep.subr.mxu0 0.0
        %399 = vmatpush1.msra.mxu0 0.0
        %400 = vmatprep.subr.mxu0 0.0
        %401 = vmatpush1.msra.mxu0 0.0
        %402 = vmatprep.subr.mxu0 0.0
        %403 = vmatpush1.msra.mxu0 0.0
        %404 = vmatprep.subr.mxu0 0.0
        %405 = vmatpush1.msra.mxu0 0.0
        %406 = vmatprep.subr.mxu0 0.0
        %407 = vmatpush1.msra.mxu0 0.0
        %408 = vmatprep.subr.mxu0 0.0
        %409 = vmatpush1.msra.mxu0 0.0
        %410 = vmatprep.subr.mxu0 0.0
        %411 = vmatpush1.msra.mxu0 0.0
        %412 = vmatprep.subr.mxu0 0.0
        %413 = vmatpush1.msra.mxu0 0.0
        %414 = vmatprep.subr.mxu0 0.0
        %415 = vmatpush1.msra.mxu0 0.0
        %416 = vmatprep.subr.mxu0 0.0
        %417 = vmatpush1.msra.mxu0 0.0
        %418 = vmatprep.subr.mxu0 0.0
        %419 = vmatpush1.msra.mxu0 0.0
        %420 = vmatprep.subr.mxu0 0.0
        %421 = vmatpush1.msra.mxu0 0.0
        %422 = vmatprep.subr.mxu0 0.0
        %423 = vmatpush1.msra.mxu0 0.0
        %424 = vmatprep.subr.mxu0 0.0
        %425 = vmatpush1.msra.mxu0 0.0
        %426 = vmatprep.subr.mxu0 0.0
        %427 = vmatpush1.msra.mxu0 0.0
        %428 = vmatprep.subr.mxu0 0.0
        %429 = vmatpush1.msra.mxu0 0.0
        %430 = vmatprep.subr.mxu0 0.0
        %431 = vmatpush1.msra.mxu0 0.0
        %432 = vmatprep.subr.mxu0 0.0
        %433 = vmatpush1.msra.mxu0 0.0
        %434 = vmatprep.subr.mxu0 0.0
        %435 = vmatpush1.msra.mxu0 0.0
        %436 = vmatprep.subr.mxu0 0.0
        %437 = vmatpush1.msra.mxu0 0.0
        %438 = vmatprep.subr.mxu0 0.0
        %439 = vmatpush1.msra.mxu0 0.0
        %440 = vmatprep.subr.mxu0 0.0
        %441 = vmatpush1.msra.mxu0 0.0
        %442 = vmatprep.subr.mxu0 0.0
        %443 = vmatpush1.msra.mxu0 0.0
        %444 = vmatprep.subr.mxu0 0.0
        %445 = vmatpush1.msra.mxu0 0.0
        %446 = vmatprep.subr.mxu0 0.0
        %447 = vmatpush1.msra.mxu0 0.0
        %448 = vmatprep.subr.mxu0 0.0
        %449 = vmatpush1.msra.mxu0 0.0
        %450 = vmatprep.subr.mxu0 0.0
        %451 = vmatpush1.msra.mxu0 0.0
        %452 = vmatprep.subr.mxu0 0.0
        %453 = vmatpush1.msra.mxu0 0.0
        %454 = vmatprep.subr.mxu0 0.0
        %455 = vmatpush1.msra.mxu0 0.0
        %456 = vmatprep.subr.mxu0 0.0
        %457 = vmatpush1.msra.mxu0 0.0
        %458 = vmatprep.subr.mxu0 0.0
        %459 = vmatpush1.msra.mxu0 0.0
        %460 = vmatprep.mubr.f32.mxu0 0.0
        %v461 = vand.u32 %v221, 4294901760
        %v462 = vsub.f32 %v221, %v461
        %463 = vmatmul.mubr.f32.gmra.mrb[0].mxu0 %v462
        %v464 = vpop.f32.mrb[0].mxu0
        %v465 = vadd.f32 %v385, %v464
        %v466 = vpop.f32.mrb[0].mxu0
        %467 = vmatprep.mubr.f32.mxu0 0.0
        %v468 = vand.u32 %v224, 4294901760
        %v469 = vsub.f32 %v224, %v468
        %470 = vmatmul.mubr.f32.gmra.mrb[0].mxu0 %v469
        %v471 = vpop.f32.mrb[0].mxu0
        %v472 = vadd.f32 %v391, %v471
        %v473 = vpop.f32.mrb[0].mxu0
        %474 = vdwg.mxu0
        %475 = vmatprep.subr.mxu0 0.0
        %v476 = vand.u32 %v218, 4294901760
        %477 = vmatpush1.msra.mxu0 %v476
        %478 = vmatprep.subr.mxu0 0.0
        %479 = vmatpush1.msra.mxu0 0.0
        %480 = vmatprep.subr.mxu0 0.0
        %481 = vmatpush1.msra.mxu0 0.0
        %482 = vmatprep.subr.mxu0 0.0
        %483 = vmatpush1.msra.mxu0 0.0
        %484 = vmatprep.subr.mxu0 0.0
        %485 = vmatpush1.msra.mxu0 0.0
        %486 = vmatprep.subr.mxu0 0.0
        %487 = vmatpush1.msra.mxu0 0.0
        %488 = vmatprep.subr.mxu0 0.0
        %489 = vmatpush1.msra.mxu0 0.0
        %490 = vmatprep.subr.mxu0 0.0
        %491 = vmatpush1.msra.mxu0 0.0
        %492 = vmatprep.subr.mxu0 0.0
        %493 = vmatpush1.msra.mxu0 0.0
        %494 = vmatprep.subr.mxu0 0.0
        %495 = vmatpush1.msra.mxu0 0.0
        %496 = vmatprep.subr.mxu0 0.0
        %497 = vmatpush1.msra.mxu0 0.0
        %498 = vmatprep.subr.mxu0 0.0
        %499 = vmatpush1.msra.mxu0 0.0
        %500 = vmatprep.subr.mxu0 0.0
        %501 = vmatpush1.msra.mxu0 0.0
        %502 = vmatprep.subr.mxu0 0.0
        %503 = vmatpush1.msra.mxu0 0.0
        %504 = vmatprep.subr.mxu0 0.0
        %505 = vmatpush1.msra.mxu0 0.0
        %506 = vmatprep.subr.mxu0 0.0
        %507 = vmatpush1.msra.mxu0 0.0
        %508 = vmatprep.subr.mxu0 0.0
        %509 = vmatpush1.msra.mxu0 0.0
        %510 = vmatprep.subr.mxu0 0.0
        %511 = vmatpush1.msra.mxu0 0.0
        %512 = vmatprep.subr.mxu0 0.0
        %513 = vmatpush1.msra.mxu0 0.0
        %514 = vmatprep.subr.mxu0 0.0
        %515 = vmatpush1.msra.mxu0 0.0
        %516 = vmatprep.subr.mxu0 0.0
        %517 = vmatpush1.msra.mxu0 0.0
        %518 = vmatprep.subr.mxu0 0.0
        %519 = vmatpush1.msra.mxu0 0.0
        %520 = vmatprep.subr.mxu0 0.0
        %521 = vmatpush1.msra.mxu0 0.0
        %522 = vmatprep.subr.mxu0 0.0
        %523 = vmatpush1.msra.mxu0 0.0
        %524 = vmatprep.subr.mxu0 0.0
        %525 = vmatpush1.msra.mxu0 0.0
        %526 = vmatprep.subr.mxu0 0.0
        %527 = vmatpush1.msra.mxu0 0.0
        %528 = vmatprep.subr.mxu0 0.0
        %529 = vmatpush1.msra.mxu0 0.0
        %530 = vmatprep.subr.mxu0 0.0
        %531 = vmatpush1.msra.mxu0 0.0
        %532 = vmatprep.subr.mxu0 0.0
        %533 = vmatpush1.msra.mxu0 0.0
        %534 = vmatprep.subr.mxu0 0.0
        %535 = vmatpush1.msra.mxu0 0.0
        %536 = vmatprep.subr.mxu0 0.0
        %537 = vmatpush1.msra.mxu0 0.0
        %538 = vmatprep.subr.mxu0 0.0
        %539 = vmatpush1.msra.mxu0 0.0
        %540 = vmatprep.mubr.f32.mxu0 0.0
        %v541 = vand.u32 %v221, 4294901760
        %v542 = vsub.f32 %v221, %v541
        %v543 = vand.u32 %v542, 4294901760
        %544 = vmatmul.mubr.f32.gmra.mrb[0].mxu0 %v543
        %v545 = vpop.f32.mrb[0].mxu0
        %v546 = vadd.f32 %v465, %v545
        %v547 = vpop.f32.mrb[0].mxu0
        %548 = vmatprep.mubr.f32.mxu0 0.0
        %v549 = vand.u32 %v224, 4294901760
        %v550 = vsub.f32 %v224, %v549
        %v551 = vand.u32 %v550, 4294901760
        %552 = vmatmul.mubr.f32.gmra.mrb[0].mxu0 %v551
        %v553 = vpop.f32.mrb[0].mxu0
        %v554 = vadd.f32 %v472, %v553
        %v555 = vpop.f32.mrb[0].mxu0
        %556 = vdwg.mxu0
        %557 = vmatprep.subr.mxu0 0.0
        %v558 = vand.u32 %v218, 4294901760
        %v559 = vsub.f32 %v218, %v558
        %v560 = vand.u32 %v559, 4294901760
        %561 = vmatpush1.msra.mxu0 %v560
        %562 = vmatprep.subr.mxu0 0.0
        %563 = vmatpush1.msra.mxu0 0.0
        %564 = vmatprep.subr.mxu0 0.0
        %565 = vmatpush1.msra.mxu0 0.0
        %566 = vmatprep.subr.mxu0 0.0
        %567 = vmatpush1.msra.mxu0 0.0
        %568 = vmatprep.subr.mxu0 0.0
        %569 = vmatpush1.msra.mxu0 0.0
        %570 = vmatprep.subr.mxu0 0.0
        %571 = vmatpush1.msra.mxu0 0.0
        %572 = vmatprep.subr.mxu0 0.0
        %573 = vmatpush1.msra.mxu0 0.0
        %574 = vmatprep.subr.mxu0 0.0
        %575 = vmatpush1.msra.mxu0 0.0
        %576 = vmatprep.subr.mxu0 0.0
        %577 = vmatpush1.msra.mxu0 0.0
        %578 = vmatprep.subr.mxu0 0.0
        %579 = vmatpush1.msra.mxu0 0.0
        %580 = vmatprep.subr.mxu0 0.0
        %581 = vmatpush1.msra.mxu0 0.0
        %582 = vmatprep.subr.mxu0 0.0
        %583 = vmatpush1.msra.mxu0 0.0
        %584 = vmatprep.subr.mxu0 0.0
        %585 = vmatpush1.msra.mxu0 0.0
        %586 = vmatprep.subr.mxu0 0.0
        %587 = vmatpush1.msra.mxu0 0.0
        %588 = vmatprep.subr.mxu0 0.0
        %589 = vmatpush1.msra.mxu0 0.0
        %590 = vmatprep.subr.mxu0 0.0
        %591 = vmatpush1.msra.mxu0 0.0
        %592 = vmatprep.subr.mxu0 0.0
        %593 = vmatpush1.msra.mxu0 0.0
        %594 = vmatprep.subr.mxu0 0.0
        %595 = vmatpush1.msra.mxu0 0.0
        %596 = vmatprep.subr.mxu0 0.0
        %597 = vmatpush1.msra.mxu0 0.0
        %598 = vmatprep.subr.mxu0 0.0
        %599 = vmatpush1.msra.mxu0 0.0
        %600 = vmatprep.subr.mxu0 0.0
        %601 = vmatpush1.msra.mxu0 0.0
        %602 = vmatprep.subr.mxu0 0.0
        %603 = vmatpush1.msra.mxu0 0.0
        %604 = vmatprep.subr.mxu0 0.0
        %605 = vmatpush1.msra.mxu0 0.0
        %606 = vmatprep.subr.mxu0 0.0
        %607 = vmatpush1.msra.mxu0 0.0
        %608 = vmatprep.subr.mxu0 0.0
        %609 = vmatpush1.msra.mxu0 0.0
        %610 = vmatprep.subr.mxu0 0.0
        %611 = vmatpush1.msra.mxu0 0.0
        %612 = vmatprep.subr.mxu0 0.0
        %613 = vmatpush1.msra.mxu0 0.0
        %614 = vmatprep.subr.mxu0 0.0
        %615 = vmatpush1.msra.mxu0 0.0
        %616 = vmatprep.subr.mxu0 0.0
        %617 = vmatpush1.msra.mxu0 0.0
        %618 = vmatprep.subr.mxu0 0.0
        %619 = vmatpush1.msra.mxu0 0.0
        %620 = vmatprep.subr.mxu0 0.0
        %621 = vmatpush1.msra.mxu0 0.0
        %622 = vmatprep.subr.mxu0 0.0
        %623 = vmatpush1.msra.mxu0 0.0
        %624 = vmatprep.mubr.f32.mxu0 0.0
        %v625 = vand.u32 %v221, 4294901760
        %626 = vmatmul.mubr.f32.gmra.mrb[0].mxu0 %v625
        %v627 = vpop.f32.mrb[0].mxu0
        %v628 = vadd.f32 %v546, %v627
        %v629 = vpop.f32.mrb[0].mxu0
        %630 = vmatprep.mubr.f32.mxu0 0.0
        %v631 = vand.u32 %v224, 4294901760
        %632 = vmatmul.mubr.f32.gmra.mrb[0].mxu0 %v631
        %v633 = vpop.f32.mrb[0].mxu0
        %v634 = vadd.f32 %v554, %v633
        %v635 = vpop.f32.mrb[0].mxu0
        %636 = vdwg.mxu0
        %637 = vmatprep.subr.mxu0 0.0
        %v638 = vand.u32 %v218, 4294901760
        %639 = vmatpush1.msra.mxu0 %v638
        %640 = vmatprep.subr.mxu0 0.0
        %641 = vmatpush1.msra.mxu0 0.0
        %642 = vmatprep.subr.mxu0 0.0
        %643 = vmatpush1.msra.mxu0 0.0
        %644 = vmatprep.subr.mxu0 0.0
        %645 = vmatpush1.msra.mxu0 0.0
        %646 = vmatprep.subr.mxu0 0.0
        %647 = vmatpush1.msra.mxu0 0.0
        %648 = vmatprep.subr.mxu0 0.0
        %649 = vmatpush1.msra.mxu0 0.0
        %650 = vmatprep.subr.mxu0 0.0
        %651 = vmatpush1.msra.mxu0 0.0
        %652 = vmatprep.subr.mxu0 0.0
        %653 = vmatpush1.msra.mxu0 0.0
        %654 = vmatprep.subr.mxu0 0.0
        %655 = vmatpush1.msra.mxu0 0.0
        %656 = vmatprep.subr.mxu0 0.0
        %657 = vmatpush1.msra.mxu0 0.0
        %658 = vmatprep.subr.mxu0 0.0
        %659 = vmatpush1.msra.mxu0 0.0
        %660 = vmatprep.subr.mxu0 0.0
        %661 = vmatpush1.msra.mxu0 0.0
        %662 = vmatprep.subr.mxu0 0.0
        %663 = vmatpush1.msra.mxu0 0.0
        %664 = vmatprep.subr.mxu0 0.0
        %665 = vmatpush1.msra.mxu0 0.0
        %666 = vmatprep.subr.mxu0 0.0
        %667 = vmatpush1.msra.mxu0 0.0
        %668 = vmatprep.subr.mxu0 0.0
        %669 = vmatpush1.msra.mxu0 0.0
        %670 = vmatprep.subr.mxu0 0.0
        %671 = vmatpush1.msra.mxu0 0.0
        %672 = vmatprep.subr.mxu0 0.0
        %673 = vmatpush1.msra.mxu0 0.0
        %674 = vmatprep.subr.mxu0 0.0
        %675 = vmatpush1.msra.mxu0 0.0
        %676 = vmatprep.subr.mxu0 0.0
        %677 = vmatpush1.msra.mxu0 0.0
        %678 = vmatprep.subr.mxu0 0.0
        %679 = vmatpush1.msra.mxu0 0.0
        %680 = vmatprep.subr.mxu0 0.0
        %681 = vmatpush1.msra.mxu0 0.0
        %682 = vmatprep.subr.mxu0 0.0
        %683 = vmatpush1.msra.mxu0 0.0
        %684 = vmatprep.subr.mxu0 0.0
        %685 = vmatpush1.msra.mxu0 0.0
        %686 = vmatprep.subr.mxu0 0.0
        %687 = vmatpush1.msra.mxu0 0.0
        %688 = vmatprep.subr.mxu0 0.0
        %689 = vmatpush1.msra.mxu0 0.0
        %690 = vmatprep.subr.mxu0 0.0
        %691 = vmatpush1.msra.mxu0 0.0
        %692 = vmatprep.subr.mxu0 0.0
        %693 = vmatpush1.msra.mxu0 0.0
        %694 = vmatprep.subr.mxu0 0.0
        %695 = vmatpush1.msra.mxu0 0.0
        %696 = vmatprep.subr.mxu0 0.0
        %697 = vmatpush1.msra.mxu0 0.0
        %698 = vmatprep.subr.mxu0 0.0
        %699 = vmatpush1.msra.mxu0 0.0
        %700 = vmatprep.subr.mxu0 0.0
        %701 = vmatpush1.msra.mxu0 0.0
        %702 = vmatprep.mubr.f32.mxu0 0.0
        %v703 = vand.u32 %v221, 4294901760
        %704 = vmatmul.mubr.f32.gmra.mrb[0].mxu0 %v703
        %v705 = vpop.f32.mrb[0].mxu0
        %v706 = vadd.f32 %v628, %v705
        %v707 = vpop.f32.mrb[0].mxu0
        %708 = vmatprep.mubr.f32.mxu0 0.0
        %v709 = vand.u32 %v224, 4294901760
        %710 = vmatmul.mubr.f32.gmra.mrb[0].mxu0 %v709
        %v711 = vpop.f32.mrb[0].mxu0
        %v712 = vadd.f32 %v634, %v711
        %v713 = vpop.f32.mrb[0].mxu0
        %714 = vdwg.mxu0
        %715 = vst [vmem:[%s184] sm:$0xff] %v706
        %716 = vst [vmem:[%s184 + $0x8] sm:$0xff] %v712
        %s717 = sand.u32 %s101, 1
        %s718 = scalar_lea.sflag [#allocation6], %s717
        %s719 = sand.u32 %s101, 1
        %s720 = smul.addr %s719, 16
        %s721 = scalar_lea.vmem [#allocation5], %s720
        // Predicated region
        $region33: #{tpu_custom_call.1} parent=27 // pred_check
          %p722 = pneg %p111
        $region34: #{tpu_custom_call.1} parent=27 // pred_check_branch
          %724 = sbr.rel (%p722) target = $region36
        $region35: #{tpu_custom_call.1} parent=27 // pred_region
          %s725 = smul.u32 2, %s28
          %s727 = ssub.s32 256, 256
          %728 = vsyncadd %s718, %s727
          %s729 = smul.addr %s27, 2
          %s730 = sadd.s32 %s725, %s729
          %s731 = smul.addr %s730, 128
          %s732 = scalar_lea.hbm %s3, %s731
          %s733 = sshll.u32 %s721, 4
          %s734 = int_to_ptr.vmem [resolvable:$true] %s733
          %739 = dma.vmem_to_hbm [thread:$0]  %s734, 256, %s732, %s718, 128, 128, 8
        $region36: #{tpu_custom_call.1} parent=27 // pred_fallthru
          _
      $region28: #{tpu_custom_call.1} parent=5 // pred_fallthru
        _
      %p740 = scmp.le.s32.totalorder 2, %s18
      // Predicated region
      $region37: #{tpu_custom_call.1} parent=5 // pred_check
        %p741 = pneg %p740
      $region38: #{tpu_custom_call.1} parent=5 // pred_check_branch
        %743 = sbr.rel (%p741) target = $region40
      $region39: #{tpu_custom_call.1} parent=5 // pred_region
        %s744 = ssub.s32 %s18, 2
        // Predicated region
        $region41: #{tpu_custom_call.1} parent=39 // pred_check
          %p745 = pneg %p117
        $region42: #{tpu_custom_call.1} parent=39 // pred_check_branch
          %747 = sbr.rel (%p745) target = $region44
        $region43: #{tpu_custom_call.1} parent=39 // pred_region
          %s748 = sand.u32 %s102, 1
          %s749 = scalar_lea.sflag [#allocation6], %s748
          %s750 = sand.u32 %s102, 1
          %s751 = smul.addr %s750, 16
          %s752 = scalar_lea.vmem [#allocation5], %s751
          %753 = dma.done %s749, 256
        $region44: #{tpu_custom_call.1} parent=39 // pred_fallthru
          _
      $region40: #{tpu_custom_call.1} parent=5 // pred_fallthru
        _
    $region6: #{tpu_custom_call.1} parent=1 // loop_footer
      %s22 = sadd.s32 1, %s18
    $region7: #{tpu_custom_call.1} parent=1 // loop_footer_branch
      %17 = sbr.rel target = $region3
    $region8: #{tpu_custom_call.1} parent=1 // loop_exit
      _
    %754 = vsyncpa [#allocation6], 1
    %s755 = scalar_lea.sflag [#allocation6], 1
    %756 = vsyncpa %s755, 1

</llo_original>
